<compile_context>
chip_gen: v7x
topology: tpu7x:2x2x1
jax: 0.10.0
libtpu: 0.0.40
codegen_flags: <defaults>
</compile_context>

<pallas_src>
import jax
import jax.numpy as jnp
from jax.experimental import pallas as pl
from jax.experimental.pallas import tpu as pltpu


def graph_node_feature_kernel(x_ref, deg_ref, emb_ref, tok_ref, o_ref):
    # x_ref:   (Bt, N,   H)  float32   node features
    # deg_ref: (Bt, N,   2)  int32     [:, :, 0] = in_degree
    #                                  [:, :, 1] = out_degree + D_in (pre-offset)
    # emb_ref: (D_in+D_out, H) float32 stacked [in_emb; out_emb]
    # tok_ref: (1, H)        float32   graph token
    # o_ref:   (Bt, N+1, H)  float32
    bt, n, h = x_ref.shape
    d_total = emb_ref.shape[0]
    m = bt * n

    x = x_ref[...]                                   # (Bt, N, H)
    deg = deg_ref[...].reshape(m, 2)                 # (Bt*N, 2)

    # Combined one-hot: each row has exactly one 1 in [0, D_in) (in-degree)
    # and one 1 in [D_in, D_total) (offset out-degree); a single MXU matmul
    # therefore yields in_emb[ind] + out_emb[outd].
    iota = jax.lax.broadcasted_iota(jnp.int32, (m, d_total), 1)
    onehot = jnp.logical_or(iota == deg[:, 0:1],
                            iota == deg[:, 1:2]).astype(jnp.float32)
    emb_feat = jnp.dot(onehot, emb_ref[...],
                       preferred_element_type=jnp.float32)      # (Bt*N, H)

    node = x + emb_feat.reshape(bt, n, h).astype(x.dtype)        # (Bt, N, H)

    tok = jnp.broadcast_to(tok_ref[...].astype(o_ref.dtype)[None, :, :],
                           (bt, 1, h))                           # (Bt, 1, H)

    # Build the full output tile in registers and store ONCE (dense, aligned
    # vst of the whole block — no per-row masked stores at sublane offset 1).
    o_ref[...] = jnp.concatenate([tok, node.astype(o_ref.dtype)], axis=1)


def _pick_block_b(B, N, H, itemsize, target_bytes=2 << 20, vmem_budget=8 << 20):
    """Graphs per grid step: big enough to amortize ~0.35us/step overhead,
    small enough that double-buffered in/out blocks stay well inside scoped
    VMEM on every TPU generation (v7x has only 64 MiB physical / 32 MiB scoped
    default)."""
    per_graph = (N + (N + 1)) * H * itemsize + N * 2 * 4   # x + out rows + degrees
    bt = max(1, min(B, target_bytes // max(per_graph, 1)))
    while bt > 1 and 2 * bt * per_graph > vmem_budget:     # 2x for double-buffering
        bt -= 1
    while B % bt:                                          # must tile B evenly
        bt -= 1
    return bt


def graph_node_feature(x, in_degree, out_degree, in_emb, out_emb, graph_token,
                       *, block_b=None):
    B, N, H = x.shape
    d_in = in_emb.shape[0]
    d_out = out_emb.shape[0]
    d_total = d_in + d_out

    # Stack the two tables and pre-offset the out-degree indices so the kernel
    # needs a single table and a single one-hot matmul.
    emb = jnp.concatenate([in_emb, out_emb], axis=0).astype(x.dtype)  # (D_total, H)
    deg = jnp.stack([in_degree.astype(jnp.int32),
                     out_degree.astype(jnp.int32) + d_in], axis=-1)   # (B, N, 2)
    tok = graph_token.astype(x.dtype)                                 # (1, H)

    if block_b is None:
        block_b = _pick_block_b(B, N, H, x.dtype.itemsize)
    grid = (B // block_b,)

    itemsize = x.dtype.itemsize
    cost = pl.CostEstimate(
        flops=int(2 * B * N * d_total * H + 2 * B * N * H),
        transcendentals=0,
        bytes_accessed=int(x.size * itemsize
                           + deg.size * 4
                           + emb.size * itemsize
                           + tok.size * itemsize
                           + B * (N + 1) * H * itemsize),
    )

    return pl.pallas_call(
        graph_node_feature_kernel,
        out_shape=jax.ShapeDtypeStruct((B, N + 1, H), x.dtype),
        grid_spec=pltpu.PrefetchScalarGridSpec(
            num_scalar_prefetch=0,
            grid=grid,
            in_specs=[
                pl.BlockSpec((block_b, N, H), lambda g: (g, 0, 0)),
                pl.BlockSpec((block_b, N, 2), lambda g: (g, 0, 0)),
                # Grid-invariant operands: single-buffer (constant index_map,
                # double-buffering would only double their VMEM footprint).
                pl.BlockSpec((d_total, H), lambda g: (0, 0),
                             pipeline_mode=pl.Buffered(1)),
                pl.BlockSpec((1, H), lambda g: (0, 0),
                             pipeline_mode=pl.Buffered(1)),
            ],
            out_specs=pl.BlockSpec((block_b, N + 1, H), lambda g: (g, 0, 0)),
        ),
        compiler_params=pltpu.CompilerParams(
            dimension_semantics=("parallel",)),   # batch axis is independent
        cost_estimate=cost,
    )(x, deg, emb, tok)


if __name__ == "__main__":
    # Small config consistent with the module's forward.
    num_heads = 4            # not used by the forward math
    num_in_degree = 32
    num_out_degree = 32
    hidden_dim = 128         # lane-dense (multiple of 128)
    n_layers = 2             # only affects nn.Linear init; no Linear in forward
    n_graph, n_node = 2, 8

    key = jax.random.PRNGKey(0)
    k_in, k_out, k_tok, k_x, k_ind, k_outd = jax.random.split(key, 6)

    # nn.Embedding init per init_params: normal(0, 0.02).
    in_emb = 0.02 * jax.random.normal(k_in, (num_in_degree, hidden_dim),
                                      jnp.float32)
    out_emb = 0.02 * jax.random.normal(k_out, (num_out_degree, hidden_dim),
                                       jnp.float32)
    graph_token = 0.02 * jax.random.normal(k_tok, (1, hidden_dim), jnp.float32)

    # Inputs: x is already a node-feature tensor [B, N, H]; degrees are indices.
    x = jax.random.normal(k_x, (n_graph, n_node, hidden_dim), jnp.float32)
    in_degree = jax.random.randint(k_ind, (n_graph, n_node), 0, num_in_degree,
                                   jnp.int32)
    out_degree = jax.random.randint(k_outd, (n_graph, n_node), 0,
                                    num_out_degree, jnp.int32)

    out = graph_node_feature(x, in_degree, out_degree,
                             in_emb, out_emb, graph_token)
    out = jax.block_until_ready(out)

    # Pure-JAX reference check (bit-exact: one-hot f32 matmul selects rows).
    node_feature = x + in_emb[in_degree] + out_emb[out_degree]
    tok_ref = jnp.broadcast_to(graph_token[None, :, :],
                               (n_graph, 1, hidden_dim))
    ref = jnp.concatenate([tok_ref, node_feature], axis=1)
    assert out.shape == (n_graph, n_node + 1, hidden_dim)
    assert jnp.allclose(out, ref, atol=1e-5, rtol=1e-5)

    print("KERNEL_OK")
</pallas_src>

<mosaic_0001>
module attributes {stable_mosaic.version = 11 : i64} {
  func.func @graph_node_feature_kernel(%arg0: i32, %arg1: memref<2x8x128xf32, #tpu.memory_space<vmem>>, %arg2: memref<2x8x2xi32, #tpu.memory_space<vmem>>, %arg3: memref<64x128xf32, #tpu.memory_space<vmem>>, %arg4: memref<1x128xf32, #tpu.memory_space<vmem>>, %arg5: memref<2x9x128xf32, #tpu.memory_space<vmem>>) attributes {dimension_semantics = [#tpu.dimension_semantics<parallel>], iteration_bounds = array<i64: 1>, scalar_prefetch = 0 : i64, scratch_operands = 0 : i64, tpu.core_type = #tpu.core_type<tc>, window_params = [{transform_indices = @transform_0, window_bounds = array<i64: 2, 8, 128>}, {transform_indices = @transform_1, window_bounds = array<i64: 2, 8, 2>}, {pipeline_mode = #tpu.pipeline_mode<synchronous>, transform_indices = @transform_2, window_bounds = array<i64: 64, 128>}, {pipeline_mode = #tpu.pipeline_mode<synchronous>, transform_indices = @transform_3, window_bounds = array<i64: 1, 128>}, {transform_indices = @transform_4, window_bounds = array<i64: 2, 9, 128>}]} {
    %c0 = arith.constant 0 : index
    %c0_0 = arith.constant 0 : index
    %c0_1 = arith.constant 0 : index
    %0 = vector.load %arg1[%c0, %c0_0, %c0_1] : memref<2x8x128xf32, #tpu.memory_space<vmem>>, vector<2x8x128xf32>
    %c0_2 = arith.constant 0 : index
    %c0_3 = arith.constant 0 : index
    %c0_4 = arith.constant 0 : index
    %1 = vector.load %arg2[%c0_2, %c0_3, %c0_4] : memref<2x8x2xi32, #tpu.memory_space<vmem>>, vector<2x8x2xi32>
    %2 = vector.shape_cast %1 : vector<2x8x2xi32> to vector<16x2xi32>
    %3 = tpu.iota {dimensions = array<i32: 1>} : vector<16x64xi32>
    %4 = vector.extract_strided_slice %2 {offsets = [0, 0], sizes = [16, 1], strides = [1, 1]} : vector<16x2xi32> to vector<16x1xi32>
    %5 = vector.broadcast %4 : vector<16x1xi32> to vector<16x64xi32>
    %6 = arith.cmpi eq, %3, %5 : vector<16x64xi32>
    %7 = vector.extract_strided_slice %2 {offsets = [0, 1], sizes = [16, 1], strides = [1, 1]} : vector<16x2xi32> to vector<16x1xi32>
    %8 = vector.broadcast %7 : vector<16x1xi32> to vector<16x64xi32>
    %9 = arith.cmpi eq, %3, %8 : vector<16x64xi32>
    %10 = arith.ori %6, %9 : vector<16x64xi1>
    %11 = arith.extui %10 : vector<16x64xi1> to vector<16x64xi32>
    %12 = arith.sitofp %11 : vector<16x64xi32> to vector<16x64xf32>
    %c0_5 = arith.constant 0 : index
    %c0_6 = arith.constant 0 : index
    %13 = vector.load %arg3[%c0_5, %c0_6] : memref<64x128xf32, #tpu.memory_space<vmem>>, vector<64x128xf32>
    %cst = arith.constant dense<0.000000e+00> : vector<16x128xf32>
    %14 = tpu.matmul %12, %13, %cst {dimension_numbers = #tpu.dot_dimension_numbers<[1], [0], [0], [1], [0, 0, 1, 1], [], []>} : vector<16x64xf32>, vector<64x128xf32>, vector<16x128xf32> -> vector<16x128xf32>
    %15 = vector.shape_cast %14 : vector<16x128xf32> to vector<2x8x128xf32>
    %16 = arith.addf %0, %15 : vector<2x8x128xf32>
    %c0_7 = arith.constant 0 : index
    %c0_8 = arith.constant 0 : index
    %17 = vector.load %arg4[%c0_7, %c0_8] : memref<1x128xf32, #tpu.memory_space<vmem>>, vector<1x128xf32>
    %18 = vector.shape_cast %17 : vector<1x128xf32> to vector<1x1x128xf32>
    %19 = vector.shape_cast %18 : vector<1x1x128xf32> to vector<1x1x128xf32>
    %20 = vector.broadcast %19 : vector<1x1x128xf32> to vector<2x1x128xf32>
    %21 = tpu.concatenate %20, %16 in 1 : vector<2x1x128xf32>, vector<2x8x128xf32> -> vector<2x9x128xf32>
    %c0_9 = arith.constant 0 : index
    %c0_10 = arith.constant 0 : index
    %c0_11 = arith.constant 0 : index
    %22 = vector.load %arg5[%c0_9, %c0_10, %c0_11] : memref<2x9x128xf32, #tpu.memory_space<vmem>>, vector<2x9x128xf32>
    tpu.vector_store %arg5[%c0_9, %c0_10, %c0_11], %21 {strides = array<i32>} : memref<2x9x128xf32, #tpu.memory_space<vmem>>, vector<2x9x128xf32>,
    return
  }
  func.func @transform_0(%arg0: i32) -> (i32, i32, i32) {
    %c0_i32 = arith.constant 0 : i32
    %c0_i32_0 = arith.constant 0 : i32
    %c0_i32_1 = arith.constant 0 : i32
    return %arg0, %c0_i32, %c0_i32_0 : i32, i32, i32
  }
  func.func @transform_1(%arg0: i32) -> (i32, i32, i32) {
    %c0_i32 = arith.constant 0 : i32
    %c0_i32_0 = arith.constant 0 : i32
    %c0_i32_1 = arith.constant 0 : i32
    return %arg0, %c0_i32, %c0_i32_0 : i32, i32, i32
  }
  func.func @transform_2(%arg0: i32) -> (i32, i32) {
    %c0_i32 = arith.constant 0 : i32
    %c0_i32_0 = arith.constant 0 : i32
    %c0_i32_1 = arith.constant 0 : i32
    return %c0_i32, %c0_i32_0 : i32, i32
  }
  func.func @transform_3(%arg0: i32) -> (i32, i32) {
    %c0_i32 = arith.constant 0 : i32
    %c0_i32_0 = arith.constant 0 : i32
    %c0_i32_1 = arith.constant 0 : i32
    return %c0_i32, %c0_i32_0 : i32, i32
  }
  func.func @transform_4(%arg0: i32) -> (i32, i32, i32) {
    %c0_i32 = arith.constant 0 : i32
    %c0_i32_0 = arith.constant 0 : i32
    %c0_i32_1 = arith.constant 0 : i32
    return %arg0, %c0_i32, %c0_i32_0 : i32, i32, i32
  }
}

</mosaic_0001>

<llo_original>
// kernel: tpu_custom_call.1
$region0: #{tpu_custom_call.1}
  #allocation0 [shape = 'u32[]', space=smem, size = 0x4, offset = 0x4, fixed_abs, tag = 'smem constant byte address 0x4 - core index']
  #allocation1 [shape = 'u32[144,128]{1,0:T(1,128)}', space=vmem, size = 0x12000, scoped, tag = 'internal scratch']
  %s0 = inlined_call_operand.vmem [shape: f32[2,8,128], index: 0, kind: input, shape index: {}]
  %s1 = inlined_call_operand.vmem [shape: s32[2,8,2], index: 1, kind: input, shape index: {}]
  %s2 = inlined_call_operand.hbm [shape: f32[64,128], index: 2, kind: input, shape index: {}]
  %s3 = inlined_call_operand.vmem [shape: f32[1,128], index: 3, kind: input, shape index: {}]
  %s4 = inlined_call_operand.vmem [shape: f32[2,9,128], index: 4, kind: output, shape index: {}]
  %s5 = sld [smem:[#allocation0]]
  $region30: #{tpu_custom_call.1} parent=0
    _
  %s7 = ssub.s32 1, %s5
  %s8 = scalar_select 0, %s7, %s5
  $region1: #{tpu_custom_call.1} parent=0
    #allocation2 [shape = 'u8[32768]{0}', space=vmem, size = 0x8000, scoped, tag = 'input window, operand 2, single buffered']
    #allocation3 [shape = 's32[1]{0}', space=sflag, size = 0x4, scoped, tag = 'scoped memory for tpu_custom_call.1']
    %9 = vsyncpa [#allocation3], 0
    // Predicated region
    $region2: #{tpu_custom_call.1} parent=1 // pred_check
      _
    $region3: #{tpu_custom_call.1} parent=1 // pred_check_branch
      %11 = sbr.rel (0) target = $region5
    $region4: #{tpu_custom_call.1} parent=1 // pred_region
      _
    $region5: #{tpu_custom_call.1} parent=1 // pred_fallthru
      _
    // Predicated region
    $region6: #{tpu_custom_call.1} parent=1 // pred_check
      _
    $region7: #{tpu_custom_call.1} parent=1 // pred_check_branch
      %13 = sbr.rel (0) target = $region9
    $region8: #{tpu_custom_call.1} parent=1 // pred_region
      _
    $region9: #{tpu_custom_call.1} parent=1 // pred_fallthru
      _
    // Predicated region
    $region10: #{tpu_custom_call.1} parent=1 // pred_check
      _
    $region11: #{tpu_custom_call.1} parent=1 // pred_check_branch
      %15 = sbr.rel (0) target = $region13
    $region12: #{tpu_custom_call.1} parent=1 // pred_region
      %s17 = ssub.s32 1024, 1024
      %18 = vsyncadd [#allocation3], %s17
      %s19 = sshll.u32 [#allocation2], 4
      %s20 = int_to_ptr.vmem [resolvable:$true] %s19
      %25 = dma.hbm_to_vmem [thread:$0]  %s2, 1024, %s20, [#allocation3], 128, 128, 8
    $region13: #{tpu_custom_call.1} parent=1 // pred_fallthru
      _
    // Predicated region
    $region14: #{tpu_custom_call.1} parent=1 // pred_check
      _
    $region15: #{tpu_custom_call.1} parent=1 // pred_check_branch
      %27 = sbr.rel (0) target = $region17
    $region16: #{tpu_custom_call.1} parent=1 // pred_region
      _
    $region17: #{tpu_custom_call.1} parent=1 // pred_fallthru
      _
    // Predicated region
    $region18: #{tpu_custom_call.1} parent=1 // pred_check
      _
    $region19: #{tpu_custom_call.1} parent=1 // pred_check_branch
      %29 = sbr.rel (0) target = $region21
    $region20: #{tpu_custom_call.1} parent=1 // pred_region
      %30 = dma.done [#allocation3], 1024
    $region21: #{tpu_custom_call.1} parent=1 // pred_fallthru
      _
    %v31 = vld [vmem:[%s0] sm:$0xff]
    %v32 = vld [vmem:[%s0 + $0x8] sm:$0xff]
    %v33 = vld [vmem:[%s1] sm:$0xff]
    %v34 = vld [vmem:[%s1 + $0x8] sm:$0xff]
    %v35 = vlaneseq
    %v36 = vand.u32 %v35, 127
    %37 = vset.pattern.permute.xlu0 0
    %38 = vperm.xlu0 %37, %v33
    %v39 = vpop.permute.xlu0 %38
    %40 = vset.pattern.permute.xlu0 0
    %41 = vperm.xlu0 %40, %v34
    %v42 = vpop.permute.xlu0 %41
    %vm43 = vcmp.eq.s32.totalorder %v36, %v39
    %vm44 = vcmp.eq.s32.totalorder %v36, %v42
    %45 = vset.pattern.permute.xlu0 1
    %46 = vperm.xlu0 %45, %v33
    %v47 = vpop.permute.xlu0 %46
    %48 = vset.pattern.permute.xlu0 1
    %49 = vperm.xlu0 %48, %v34
    %v50 = vpop.permute.xlu0 %49
    %vm51 = vcmp.eq.s32.totalorder %v36, %v47
    %vm52 = vcmp.eq.s32.totalorder %v36, %v50
    %vm53 = vmor %vm43, %vm51
    %vm54 = vmor %vm44, %vm52
    %v55 = vsel %vm53, 1, 0
    %v56 = vsel %vm54, 1, 0
    %v57 = vcvt.s32.f32 %v55
    %v58 = vcvt.s32.f32 %v56
    %v59 = vld [vmem:[#allocation2] sm:$0xff]
    %v60 = vld [vmem:[#allocation2 + $0x8] sm:$0xff]
    %v61 = vld [vmem:[#allocation2 + $0x10] sm:$0xff]
    %v62 = vld [vmem:[#allocation2 + $0x18] sm:$0xff]
    %v63 = vld [vmem:[#allocation2 + $0x20] sm:$0xff]
    %v64 = vld [vmem:[#allocation2 + $0x28] sm:$0xff]
    %v65 = vld [vmem:[#allocation2 + $0x30] sm:$0xff]
    %v66 = vld [vmem:[#allocation2 + $0x38] sm:$0xff]
    %vm67 = vcmask 523264
    %v69 = vsel %vm67, %v57, 0
    %v72 = vsel %vm67, %v58, 0
    %74 = vmatprep.subr.mxu0 0.0
    %75 = vmatpush1.msra.mxu0 %v59
    %76 = vmatprep.subr.mxu0 0.0
    %77 = vmatpush1.msra.mxu0 %v60
    %78 = vmatprep.subr.mxu0 0.0
    %79 = vmatpush1.msra.mxu0 %v61
    %80 = vmatprep.subr.mxu0 0.0
    %81 = vmatpush1.msra.mxu0 %v62
    %82 = vmatprep.subr.mxu0 0.0
    %83 = vmatpush1.msra.mxu0 %v63
    %84 = vmatprep.subr.mxu0 0.0
    %85 = vmatpush1.msra.mxu0 %v64
    %86 = vmatprep.subr.mxu0 0.0
    %87 = vmatpush1.msra.mxu0 %v65
    %88 = vmatprep.subr.mxu0 0.0
    %89 = vmatpush1.msra.mxu0 %v66
    %90 = vmatprep.subr.mxu0 0.0
    %91 = vmatpush1.msra.mxu0 0.0
    %92 = vmatprep.subr.mxu0 0.0
    %93 = vmatpush1.msra.mxu0 0.0
    %94 = vmatprep.subr.mxu0 0.0
    %95 = vmatpush1.msra.mxu0 0.0
    %96 = vmatprep.subr.mxu0 0.0
    %97 = vmatpush1.msra.mxu0 0.0
    %98 = vmatprep.subr.mxu0 0.0
    %99 = vmatpush1.msra.mxu0 0.0
    %100 = vmatprep.subr.mxu0 0.0
    %101 = vmatpush1.msra.mxu0 0.0
    %102 = vmatprep.subr.mxu0 0.0
    %103 = vmatpush1.msra.mxu0 0.0
    %104 = vmatprep.subr.mxu0 0.0
    %105 = vmatpush1.msra.mxu0 0.0
    %106 = vmatprep.subr.mxu0 0.0
    %107 = vmatpush1.msra.mxu0 0.0
    %108 = vmatprep.subr.mxu0 0.0
    %109 = vmatpush1.msra.mxu0 0.0
    %110 = vmatprep.subr.mxu0 0.0
    %111 = vmatpush1.msra.mxu0 0.0
    %112 = vmatprep.subr.mxu0 0.0
    %113 = vmatpush1.msra.mxu0 0.0
    %114 = vmatprep.subr.mxu0 0.0
    %115 = vmatpush1.msra.mxu0 0.0
    %116 = vmatprep.subr.mxu0 0.0
    %117 = vmatpush1.msra.mxu0 0.0
    %118 = vmatprep.subr.mxu0 0.0
    %119 = vmatpush1.msra.mxu0 0.0
    %120 = vmatprep.subr.mxu0 0.0
    %121 = vmatpush1.msra.mxu0 0.0
    %122 = vmatprep.subr.mxu0 0.0
    %123 = vmatpush1.msra.mxu0 0.0
    %124 = vmatprep.subr.mxu0 0.0
    %125 = vmatpush1.msra.mxu0 0.0
    %126 = vmatprep.subr.mxu0 0.0
    %127 = vmatpush1.msra.mxu0 0.0
    %128 = vmatprep.subr.mxu0 0.0
    %129 = vmatpush1.msra.mxu0 0.0
    %130 = vmatprep.subr.mxu0 0.0
    %131 = vmatpush1.msra.mxu0 0.0
    %132 = vmatprep.subr.mxu0 0.0
    %133 = vmatpush1.msra.mxu0 0.0
    %134 = vmatprep.subr.mxu0 0.0
    %135 = vmatpush1.msra.mxu0 0.0
    %136 = vmatprep.subr.mxu0 0.0
    %137 = vmatpush1.msra.mxu0 0.0
    %138 = vmatprep.mubr.f32.mxu0 0.0
    %139 = vmatmul.mubr.f32.gmra.mrb[0].mxu0 %v69
    %v140 = vpop.f32.mrb[0].mxu0
    %v141 = vadd.f32 0.0, %v140
    %v142 = vpop.f32.mrb[0].mxu0
    %143 = vmatprep.mubr.f32.mxu0 0.0
    %144 = vmatmul.mubr.f32.gmra.mrb[0].mxu0 %v72
    %v145 = vpop.f32.mrb[0].mxu0
    %v146 = vadd.f32 0.0, %v145
    %v147 = vpop.f32.mrb[0].mxu0
    %148 = vdwg.mxu0
    %v149 = vadd.f32 %v31, %v141
    %v150 = vadd.f32 %v32, %v146
    %v151 = vld [vmem:[%s3] sm:$0x1]
    %v154 = vrot.slane %v149, 7
    %v155 = vrot.slane %v150, 7
    %vm158 = vcmask 1040384
    %v159 = vsel %vm158, %v151, %v154
    %v160 = vsel %vm158, %v151, %v155
    %161 = vst [vmem:[%s4] sm:$0xff] %v159
    %162 = vst [vmem:[%s4 + $0x8] sm:$0x1] %v154
    %163 = vst [vmem:[%s4 + $0x10] sm:$0xff] %v160
    %164 = vst [vmem:[%s4 + $0x18] sm:$0x1] %v155
    // Predicated region
    $region22: #{tpu_custom_call.1} parent=1 // pred_check
      _
    $region23: #{tpu_custom_call.1} parent=1 // pred_check_branch
      %166 = sbr.rel (0) target = $region25
    $region24: #{tpu_custom_call.1} parent=1 // pred_region
      _
    $region25: #{tpu_custom_call.1} parent=1 // pred_fallthru
      _
    // Predicated region
    $region26: #{tpu_custom_call.1} parent=1 // pred_check
      _
    $region27: #{tpu_custom_call.1} parent=1 // pred_check_branch
      %168 = sbr.rel (0) target = $region29
    $region28: #{tpu_custom_call.1} parent=1 // pred_region
      _
    $region29: #{tpu_custom_call.1} parent=1 // pred_fallthru
      _
    %169 = vsyncpa [#allocation3], 1

</llo_original>
